<compile_context>
chip_gen: v7x
topology: tpu7x:2x2x1
jax: 0.10.0
libtpu: 0.0.40
codegen_flags: <defaults>
</compile_context>

<pallas_src>
import jax
import jax.numpy as jnp
from jax import lax
from jax.experimental import pallas as pl
from jax.experimental.pallas import tpu as pltpu


def keypoint_encoder_kernel(pos_ref, ids_ref, w_ref, b_ref, table_ref,
                            type_out_ref, pos_out_ref):
    # ---- MLP branch: single Linear layer (num_layers=1, relu_last=False => no ReLU) ----
    x = pos_ref[...]                                       # [TM, D_in]
    y = jnp.dot(x, w_ref[...], preferred_element_type=jnp.float32)
    y = y + b_ref[...]                                     # f32 bias add (VPU-safe on v5e)
    pos_out_ref[...] = y.astype(pos_out_ref.dtype)

    # ---- Embedding branch: row gather via one-hot @ table (MXU-friendly) ----
    ids = ids_ref[...]                                     # [TM, 1] int32
    tm = ids.shape[0]
    nj = table_ref.shape[0]                                # padded to a multiple of 8
    iota = lax.broadcasted_iota(jnp.int32, (tm, nj), 1)
    onehot = (iota == ids).astype(table_ref.dtype)         # [TM, nj]; id=-1 -> zero row
    te = jnp.dot(onehot, table_ref[...], preferred_element_type=jnp.float32)
    type_out_ref[...] = te.astype(type_out_ref.dtype)


def _round_up(x, m):
    return ((x + m - 1) // m) * m


def _cdiv(a, b):
    return (a + b - 1) // b


def _default_row_tile_cap():
    """Chip-aware cap on the streamed row tile."""
    try:
        kind = jax.devices()[0].device_kind.lower()
    except Exception:
        return 512
    if "v7" in kind:
        return 2048   # 3.2 TB/s HBM per TC: bigger steps amortize per-step overhead
    return 512        # v5e / v6e: 512-row steps already ~85%+ of HBM roofline


def _pick_row_tiling(M, tm_cap):
    """Return (tm, num_tiles): tm is a multiple of 8, tm <= tm_cap, and the grid has
    >= 2 tiles whenever M allows (so v7x's two TensorCores both get work), while
    keeping per-tile padding minimal."""
    M8 = _round_up(max(M, 1), 8)
    if M8 < 16:                       # can't split 8 rows into two useful tiles
        return M8, 1
    num_tiles = max(2, _cdiv(M8, tm_cap))
    tm = _round_up(_cdiv(M8, num_tiles), 8)
    while tm > tm_cap:                # rounding can push tm just past the cap
        num_tiles += 1
        tm = _round_up(_cdiv(M8, num_tiles), 8)
    return tm, num_tiles


def keypoint_encoder(pos_feats, joint_types, w, b, type_table, *,
                     tm=None, io_dtype=jnp.float32):
    """pos_feats: [B, N, D_in] f32, joint_types: [B, N] int32,
       w: [D_in, D_out] f32, b: [D_out] f32, type_table: [num_joints, D_out] f32.
       io_dtype: dtype used for streamed inputs/outputs (f32 exact; bf16 halves traffic).
       Returns (type_embed [B, N, D_out], pos_embed [B, N, D_out]) in io_dtype."""
    B, N, D_in = pos_feats.shape
    D_out = w.shape[1]
    num_joints = type_table.shape[0]
    M = B * N

    # ---- adaptive, chip-aware row tiling ----
    tm_cap = _default_row_tile_cap() if tm is None else tm
    tm, num_tiles = _pick_row_tiling(M, tm_cap)
    M_pad = tm * num_tiles

    # Embedding table rows padded to a multiple of 8 (sublane alignment), host-side.
    nj_pad = _round_up(num_joints, 8)

    x2d = pos_feats.reshape(M, D_in).astype(io_dtype)
    ids2d = joint_types.reshape(M, 1).astype(jnp.int32)
    if M_pad != M:
        x2d = jnp.pad(x2d, ((0, M_pad - M), (0, 0)))
        # id = -1 on padded rows -> one-hot matches nothing -> zero output rows.
        ids2d = jnp.pad(ids2d, ((0, M_pad - M), (0, 0)), constant_values=-1)
    table = type_table.astype(io_dtype)
    if nj_pad != num_joints:
        table = jnp.pad(table, ((0, nj_pad - num_joints), (0, 0)))
    w_io = w.astype(io_dtype)
    b2d = b.reshape(1, D_out).astype(jnp.float32)   # bias add stays f32 (exact, VPU-safe)

    grid = (num_tiles,)

    grid_spec = pltpu.PrefetchScalarGridSpec(
        num_scalar_prefetch=0,
        grid=grid,
        in_specs=[
            # Streamed per row tile (double-buffered by Pallas).
            pl.BlockSpec((tm, D_in), lambda i: (i, 0)),
            pl.BlockSpec((tm, 1), lambda i: (i, 0)),
            # VMEM-resident parameters (constant index_map across the grid).
            pl.BlockSpec((D_in, D_out), lambda i: (0, 0)),
            pl.BlockSpec((1, D_out), lambda i: (0, 0)),
            pl.BlockSpec((nj_pad, D_out), lambda i: (0, 0)),
        ],
        out_specs=[
            pl.BlockSpec((tm, D_out), lambda i: (i, 0)),
            pl.BlockSpec((tm, D_out), lambda i: (i, 0)),
        ],
    )

    type_embed, pos_embed = pl.pallas_call(
        keypoint_encoder_kernel,
        grid_spec=grid_spec,
        out_shape=(
            jax.ShapeDtypeStruct((M_pad, D_out), io_dtype),
            jax.ShapeDtypeStruct((M_pad, D_out), io_dtype),
        ),
        compiler_params=pltpu.CompilerParams(
            # Independent row tiles -> shard across TensorCores on v7x.
            dimension_semantics=("parallel",)),
    )(x2d, ids2d, w_io, b2d, table)

    return (type_embed[:M].reshape(B, N, D_out),
            pos_embed[:M].reshape(B, N, D_out))


if __name__ == "__main__":
    # Module config (w_mlp=True, w_type=True), small but MXU/VPU-friendly sizes.
    B, N = 2, 8                 # batch, keypoints per sample  -> M = 16 -> two 8-row tiles
    D_in = 128                  # mlp_cfg input_dim
    D_out = 128                 # mlp_cfg output_dim == dim_size
    num_joints = 17             # COCO-style joint count

    key = jax.random.PRNGKey(0)
    k1, k2, k3, k4, k5 = jax.random.split(key, 5)

    pos_feats = jax.random.normal(k1, (B, N, D_in), dtype=jnp.float32)
    joint_types = jax.random.randint(k2, (B, N), 0, num_joints, dtype=jnp.int32)

    # Deterministic synthetic parameters (shapes from nn.Linear / nn.Embedding in __init__).
    w = jax.random.normal(k3, (D_in, D_out), dtype=jnp.float32) / jnp.sqrt(D_in)
    b = jax.random.normal(k4, (D_out,), dtype=jnp.float32) * 0.01
    type_table = jax.random.normal(k5, (num_joints, D_out), dtype=jnp.float32)

    type_embed, pos_embed = keypoint_encoder(pos_feats, joint_types, w, b, type_table)
    jax.block_until_ready((type_embed, pos_embed))

    # Reference in plain JAX (matches the PyTorch forward).
    pos_ref = pos_feats.reshape(B * N, D_in) @ w + b
    type_ref = type_table[joint_types.reshape(-1)]

    assert jnp.allclose(pos_embed.reshape(B * N, D_out), pos_ref, atol=1e-4, rtol=1e-4)
    assert jnp.allclose(type_embed.reshape(B * N, D_out), type_ref, atol=1e-4, rtol=1e-4)

    print("KERNEL_OK")
</pallas_src>

<mosaic_0001>
module attributes {stable_mosaic.version = 11 : i64} {
  func.func @keypoint_encoder_kernel(%arg0: i32, %arg1: memref<8x128xf32, #tpu.memory_space<vmem>>, %arg2: memref<8x1xi32, #tpu.memory_space<vmem>>, %arg3: memref<128x128xf32, #tpu.memory_space<vmem>>, %arg4: memref<1x128xf32, #tpu.memory_space<vmem>>, %arg5: memref<24x128xf32, #tpu.memory_space<vmem>>, %arg6: memref<8x128xf32, #tpu.memory_space<vmem>>, %arg7: memref<8x128xf32, #tpu.memory_space<vmem>>) attributes {dimension_semantics = [#tpu.dimension_semantics<parallel>], iteration_bounds = array<i64: 2>, scalar_prefetch = 0 : i64, scratch_operands = 0 : i64, tpu.core_type = #tpu.core_type<tc>, window_params = [{transform_indices = @transform_0, window_bounds = array<i64: 8, 128>}, {transform_indices = @transform_1, window_bounds = array<i64: 8, 1>}, {pipeline_mode = #tpu.pipeline_mode<synchronous>, transform_indices = @transform_2, window_bounds = array<i64: 128, 128>}, {pipeline_mode = #tpu.pipeline_mode<synchronous>, transform_indices = @transform_3, window_bounds = array<i64: 1, 128>}, {pipeline_mode = #tpu.pipeline_mode<synchronous>, transform_indices = @transform_4, window_bounds = array<i64: 24, 128>}, {transform_indices = @transform_5, window_bounds = array<i64: 8, 128>}, {transform_indices = @transform_6, window_bounds = array<i64: 8, 128>}]} {
    %c0 = arith.constant 0 : index
    %c0_0 = arith.constant 0 : index
    %0 = vector.load %arg1[%c0, %c0_0] : memref<8x128xf32, #tpu.memory_space<vmem>>, vector<8x128xf32>
    %c0_1 = arith.constant 0 : index
    %c0_2 = arith.constant 0 : index
    %1 = vector.load %arg3[%c0_1, %c0_2] : memref<128x128xf32, #tpu.memory_space<vmem>>, vector<128x128xf32>
    %cst = arith.constant dense<0.000000e+00> : vector<8x128xf32>
    %2 = tpu.matmul %0, %1, %cst {dimension_numbers = #tpu.dot_dimension_numbers<[1], [0], [0], [1], [0, 0, 1, 1], [], []>} : vector<8x128xf32>, vector<128x128xf32>, vector<8x128xf32> -> vector<8x128xf32>
    %c0_3 = arith.constant 0 : index
    %c0_4 = arith.constant 0 : index
    %3 = vector.load %arg4[%c0_3, %c0_4] : memref<1x128xf32, #tpu.memory_space<vmem>>, vector<1x128xf32>
    %4 = vector.broadcast %3 : vector<1x128xf32> to vector<8x128xf32>
    %5 = arith.addf %2, %4 : vector<8x128xf32>
    %c0_5 = arith.constant 0 : index
    %c0_6 = arith.constant 0 : index
    %6 = vector.load %arg7[%c0_5, %c0_6] : memref<8x128xf32, #tpu.memory_space<vmem>>, vector<8x128xf32>
    tpu.vector_store %arg7[%c0_5, %c0_6], %5 {strides = array<i32>} : memref<8x128xf32, #tpu.memory_space<vmem>>, vector<8x128xf32>,
    %c0_7 = arith.constant 0 : index
    %c0_8 = arith.constant 0 : index
    %7 = vector.load %arg2[%c0_7, %c0_8] : memref<8x1xi32, #tpu.memory_space<vmem>>, vector<8x1xi32>
    %8 = tpu.iota {dimensions = array<i32: 1>} : vector<8x24xi32>
    %9 = vector.broadcast %7 : vector<8x1xi32> to vector<8x24xi32>
    %10 = arith.cmpi eq, %8, %9 : vector<8x24xi32>
    %11 = arith.extui %10 : vector<8x24xi1> to vector<8x24xi32>
    %12 = arith.sitofp %11 : vector<8x24xi32> to vector<8x24xf32>
    %c0_9 = arith.constant 0 : index
    %c0_10 = arith.constant 0 : index
    %13 = vector.load %arg5[%c0_9, %c0_10] : memref<24x128xf32, #tpu.memory_space<vmem>>, vector<24x128xf32>
    %cst_11 = arith.constant dense<0.000000e+00> : vector<8x128xf32>
    %14 = tpu.matmul %12, %13, %cst_11 {dimension_numbers = #tpu.dot_dimension_numbers<[1], [0], [0], [1], [0, 0, 1, 1], [], []>} : vector<8x24xf32>, vector<24x128xf32>, vector<8x128xf32> -> vector<8x128xf32>
    %c0_12 = arith.constant 0 : index
    %c0_13 = arith.constant 0 : index
    %15 = vector.load %arg6[%c0_12, %c0_13] : memref<8x128xf32, #tpu.memory_space<vmem>>, vector<8x128xf32>
    tpu.vector_store %arg6[%c0_12, %c0_13], %14 {strides = array<i32>} : memref<8x128xf32, #tpu.memory_space<vmem>>, vector<8x128xf32>,
    return
  }
  func.func @transform_0(%arg0: i32) -> (i32, i32) {
    %c0_i32 = arith.constant 0 : i32
    %c0_i32_0 = arith.constant 0 : i32
    return %arg0, %c0_i32 : i32, i32
  }
  func.func @transform_1(%arg0: i32) -> (i32, i32) {
    %c0_i32 = arith.constant 0 : i32
    %c0_i32_0 = arith.constant 0 : i32
    return %arg0, %c0_i32 : i32, i32
  }
  func.func @transform_2(%arg0: i32) -> (i32, i32) {
    %c0_i32 = arith.constant 0 : i32
    %c0_i32_0 = arith.constant 0 : i32
    %c0_i32_1 = arith.constant 0 : i32
    return %c0_i32, %c0_i32_0 : i32, i32
  }
  func.func @transform_3(%arg0: i32) -> (i32, i32) {
    %c0_i32 = arith.constant 0 : i32
    %c0_i32_0 = arith.constant 0 : i32
    %c0_i32_1 = arith.constant 0 : i32
    return %c0_i32, %c0_i32_0 : i32, i32
  }
  func.func @transform_4(%arg0: i32) -> (i32, i32) {
    %c0_i32 = arith.constant 0 : i32
    %c0_i32_0 = arith.constant 0 : i32
    %c0_i32_1 = arith.constant 0 : i32
    return %c0_i32, %c0_i32_0 : i32, i32
  }
  func.func @transform_5(%arg0: i32) -> (i32, i32) {
    %c0_i32 = arith.constant 0 : i32
    %c0_i32_0 = arith.constant 0 : i32
    return %arg0, %c0_i32 : i32, i32
  }
  func.func @transform_6(%arg0: i32) -> (i32, i32) {
    %c0_i32 = arith.constant 0 : i32
    %c0_i32_0 = arith.constant 0 : i32
    return %arg0, %c0_i32 : i32, i32
  }
}

</mosaic_0001>

<llo_original>
// kernel: tpu_custom_call.1
$region0: #{tpu_custom_call.1}
  #allocation0 [shape = 'u32[]', space=smem, size = 0x4, offset = 0x4, fixed_abs, tag = 'smem constant byte address 0x4 - core index']
  #allocation1 [shape = 'u32[144,128]{1,0:T(1,128)}', space=vmem, size = 0x12000, scoped, tag = 'internal scratch']
  %s0 = inlined_call_operand.hbm [shape: f32[16,128], index: 0, kind: input, shape index: {}]
  %s1 = inlined_call_operand.vmem [shape: s32[16,1], index: 1, kind: input, shape index: {}]
  %s2 = inlined_call_operand.hbm [shape: f32[128,128], index: 2, kind: input, shape index: {}]
  %s3 = inlined_call_operand.vmem [shape: f32[1,128], index: 3, kind: input, shape index: {}]
  %s4 = inlined_call_operand.vmem [shape: f32[24,128], index: 4, kind: input, shape index: {}]
  %s5 = inlined_call_operand.hbm [shape: f32[16,128], index: 5, kind: output, shape index: {0}]
  %s6 = inlined_call_operand.hbm [shape: f32[16,128], index: 6, kind: output, shape index: {1}]
  %7 = xla_tuple %s5, %s6
  %s8 = sld [smem:[#allocation0]]
  $region69: #{tpu_custom_call.1} parent=0
    _
  %s10 = ssub.s32 1, %s8
  %s11 = scalar_select 0, %s10, %s8
  $region1: #{tpu_custom_call.1} parent=0
    #allocation2 [shape = 'u8[8192]{0}', space=vmem, size = 0x2000, scoped, tag = 'input window, operand 0']
    #allocation3 [shape = 's32[2]{0}', space=sflag, size = 0x8, scoped, tag = 'scoped memory for tpu_custom_call.1']
    #allocation4 [shape = 's32[2]{0}', space=sflag, size = 0x8, scoped, tag = 'scoped memory for tpu_custom_call.1']
    #allocation5 [shape = 'u8[65536]{0}', space=vmem, size = 0x10000, scoped, tag = 'input window, operand 2, single buffered']
    #allocation6 [shape = 's32[1]{0}', space=sflag, size = 0x4, scoped, tag = 'scoped memory for tpu_custom_call.1']
    #allocation7 [shape = 'u8[8192]{0}', space=vmem, size = 0x2000, scoped, tag = 'output window, operand 0']
    #allocation8 [shape = 'u8[8192]{0}', space=vmem, size = 0x2000, scoped, tag = 'output window, operand 1']
    #allocation9 [shape = 's32[2]{0}', space=sflag, size = 0x8, scoped, tag = 'scoped memory for tpu_custom_call.1']
    %12 = vsyncpa [#allocation3], 0
    %s13 = scalar_lea.sflag [#allocation3], 1
    %14 = vsyncpa %s13, 0
    %15 = vsyncpa [#allocation6], 0
    %16 = vsyncpa [#allocation4], 0
    %s17 = scalar_lea.sflag [#allocation4], 1
    %18 = vsyncpa %s17, 0
    %19 = vsyncpa [#allocation9], 0
    %s20 = scalar_lea.sflag [#allocation9], 1
    %21 = vsyncpa %s20, 0
    loop: start=0, step=1, limit=4
    $region2: #{tpu_custom_call.1} parent=1 // loop_pre_header
      _
    $region3: #{tpu_custom_call.1} parent=1 // loop_header
      %s23 = sphi 0, %s27
      %p24 = scmp.ge.s32.totalorder %s23, 4
      %s33 = sphi 0, %s35
      %s36 = sphi 0, %s33
      %s37 = sphi 0, %s36
      %s53 = sphi 0, %s37
      %s59 = sphi 0, %s61
      %s62 = sphi 0, %s59
      %s63 = sphi 0, %s62
      %s79 = sphi 0, %s63
      %s83 = sphi 0, %s83
      %s85 = sphi 0, %s83
      %s86 = sphi 0, %s85
      %s100 = sphi 0, %s86
      %s104 = sphi 0, %s104
      %s106 = sphi 0, %s104
      %s107 = sphi 0, %s106
      %s121 = sphi 0, %s107
      %s125 = sphi 0, %s125
      %s127 = sphi 0, %s125
      %s128 = sphi 0, %s127
      %s142 = sphi 0, %s128
      %s148 = sphi 0, %s150
      %s151 = sphi 0, %s148
      %s152 = sphi 0, %s151
      %s168 = sphi 0, %s152
      %s174 = sphi 0, %s176
      %s177 = sphi 0, %s174
      %s178 = sphi 0, %s177
      %s194 = sphi 0, %s178
    $region4: #{tpu_custom_call.1} parent=1 // loop_header_branch
      %26 = sbr.rel (%p24) target = $region8
    $region5: #{tpu_custom_call.1} parent=1 // loop_body
      %s28 = ssub.s32 %s23, 1
      %s29 = ssub.s32 %s23, 2
      %s30 = sadd.s32 %s23, 1
      %s31 = ssub.s32 %s23, %s30
      %p32 = scmp.eq.s32.totalorder %s31, 0
      %s34 = sadd.s32 %s33, 1
      %s35 = scalar_select %p32, %s33, %s34
      %p38 = pneg %p32
      %p39 = scmp.eq.s32.totalorder %s23, 1
      %p40 = por %p38, %p39
      %p41 = scmp.ne.s32.totalorder %s33, %s36
      %p42 = scmp.eq.s32.totalorder %s23, 0
      %p43 = por %p41, %p42
      %p44 = scmp.ne.s32.totalorder %s33, %s36
      %p45 = scmp.eq.s32.totalorder %s28, 1
      %p46 = por %p44, %p45
      %p47 = scmp.ne.s32.totalorder %s36, %s37
      %p48 = scmp.eq.s32.totalorder %s28, 0
      %p49 = por %p47, %p48
      %p50 = scmp.ne.s32.totalorder %s36, %s37
      %p51 = scmp.eq.s32.totalorder %s29, 1
      %p52 = por %p50, %p51
      %p54 = scmp.ne.s32.totalorder %s37, %s53
      %p55 = scmp.eq.s32.totalorder %s29, 0
      %p56 = por %p54, %p55
      %s57 = ssub.s32 %s23, %s30
      %p58 = scmp.eq.s32.totalorder %s57, 0
      %s60 = sadd.s32 %s59, 1
      %s61 = scalar_select %p58, %s59, %s60
      %p64 = pneg %p58
      %p65 = scmp.eq.s32.totalorder %s23, 1
      %p66 = por %p64, %p65
      %p67 = scmp.ne.s32.totalorder %s59, %s62
      %p68 = scmp.eq.s32.totalorder %s23, 0
      %p69 = por %p67, %p68
      %p70 = scmp.ne.s32.totalorder %s59, %s62
      %p71 = scmp.eq.s32.totalorder %s28, 1
      %p72 = por %p70, %p71
      %p73 = scmp.ne.s32.totalorder %s62, %s63
      %p74 = scmp.eq.s32.totalorder %s28, 0
      %p75 = por %p73, %p74
      %p76 = scmp.ne.s32.totalorder %s62, %s63
      %p77 = scmp.eq.s32.totalorder %s29, 1
      %p78 = por %p76, %p77
      %p80 = scmp.ne.s32.totalorder %s63, %s79
      %p81 = scmp.eq.s32.totalorder %s29, 0
      %p82 = por %p80, %p81
      %s84 = sadd.s32 %s83, 1
      %p87 = scmp.eq.s32.totalorder %s23, 1
      %p88 = scmp.ne.s32.totalorder %s83, %s85
      %p89 = scmp.eq.s32.totalorder %s23, 0
      %p90 = por %p88, %p89
      %p91 = scmp.ne.s32.totalorder %s83, %s85
      %p92 = scmp.eq.s32.totalorder %s28, 1
      %p93 = por %p91, %p92
      %p94 = scmp.ne.s32.totalorder %s85, %s86
      %p95 = scmp.eq.s32.totalorder %s28, 0
      %p96 = por %p94, %p95
      %p97 = scmp.ne.s32.totalorder %s85, %s86
      %p98 = scmp.eq.s32.totalorder %s29, 1
      %p99 = por %p97, %p98
      %p101 = scmp.ne.s32.totalorder %s86, %s100
      %p102 = scmp.eq.s32.totalorder %s29, 0
      %p103 = por %p101, %p102
      %s105 = sadd.s32 %s104, 1
      %p108 = scmp.eq.s32.totalorder %s23, 1
      %p109 = scmp.ne.s32.totalorder %s104, %s106
      %p110 = scmp.eq.s32.totalorder %s23, 0
      %p111 = por %p109, %p110
      %p112 = scmp.ne.s32.totalorder %s104, %s106
      %p113 = scmp.eq.s32.totalorder %s28, 1
      %p114 = por %p112, %p113
      %p115 = scmp.ne.s32.totalorder %s106, %s107
      %p116 = scmp.eq.s32.totalorder %s28, 0
      %p117 = por %p115, %p116
      %p118 = scmp.ne.s32.totalorder %s106, %s107
      %p119 = scmp.eq.s32.totalorder %s29, 1
      %p120 = por %p118, %p119
      %p122 = scmp.ne.s32.totalorder %s107, %s121
      %p123 = scmp.eq.s32.totalorder %s29, 0
      %p124 = por %p122, %p123
      %s126 = sadd.s32 %s125, 1
      %p129 = scmp.eq.s32.totalorder %s23, 1
      %p130 = scmp.ne.s32.totalorder %s125, %s127
      %p131 = scmp.eq.s32.totalorder %s23, 0
      %p132 = por %p130, %p131
      %p133 = scmp.ne.s32.totalorder %s125, %s127
      %p134 = scmp.eq.s32.totalorder %s28, 1
      %p135 = por %p133, %p134
      %p136 = scmp.ne.s32.totalorder %s127, %s128
      %p137 = scmp.eq.s32.totalorder %s28, 0
      %p138 = por %p136, %p137
      %p139 = scmp.ne.s32.totalorder %s127, %s128
      %p140 = scmp.eq.s32.totalorder %s29, 1
      %p141 = por %p139, %p140
      %p143 = scmp.ne.s32.totalorder %s128, %s142
      %p144 = scmp.eq.s32.totalorder %s29, 0
      %p145 = por %p143, %p144
      %s146 = ssub.s32 %s23, %s30
      %p147 = scmp.eq.s32.totalorder %s146, 0
      %s149 = sadd.s32 %s148, 1
      %s150 = scalar_select %p147, %s148, %s149
      %p153 = pneg %p147
      %p154 = scmp.eq.s32.totalorder %s23, 1
      %p155 = por %p153, %p154
      %p156 = scmp.ne.s32.totalorder %s148, %s151
      %p157 = scmp.eq.s32.totalorder %s23, 0
      %p158 = por %p156, %p157
      %p159 = scmp.ne.s32.totalorder %s148, %s151
      %p160 = scmp.eq.s32.totalorder %s28, 1
      %p161 = por %p159, %p160
      %p162 = scmp.ne.s32.totalorder %s151, %s152
      %p163 = scmp.eq.s32.totalorder %s28, 0
      %p164 = por %p162, %p163
      %p165 = scmp.ne.s32.totalorder %s151, %s152
      %p166 = scmp.eq.s32.totalorder %s29, 1
      %p167 = por %p165, %p166
      %p169 = scmp.ne.s32.totalorder %s152, %s168
      %p170 = scmp.eq.s32.totalorder %s29, 0
      %p171 = por %p169, %p170
      %s172 = ssub.s32 %s23, %s30
      %p173 = scmp.eq.s32.totalorder %s172, 0
      %s175 = sadd.s32 %s174, 1
      %s176 = scalar_select %p173, %s174, %s175
      %p179 = pneg %p173
      %p180 = scmp.eq.s32.totalorder %s23, 1
      %p181 = por %p179, %p180
      %p182 = scmp.ne.s32.totalorder %s174, %s177
      %p183 = scmp.eq.s32.totalorder %s23, 0
      %p184 = por %p182, %p183
      %p185 = scmp.ne.s32.totalorder %s174, %s177
      %p186 = scmp.eq.s32.totalorder %s28, 1
      %p187 = por %p185, %p186
      %p188 = scmp.ne.s32.totalorder %s177, %s178
      %p189 = scmp.eq.s32.totalorder %s28, 0
      %p190 = por %p188, %p189
      %p191 = scmp.ne.s32.totalorder %s177, %s178
      %p192 = scmp.eq.s32.totalorder %s29, 1
      %p193 = por %p191, %p192
      %p195 = scmp.ne.s32.totalorder %s178, %s194
      %p196 = scmp.eq.s32.totalorder %s29, 0
      %p197 = por %p195, %p196
      %p198 = scmp.le.s32.totalorder 1, %s23
      %p199 = scmp.lt.s32.totalorder %s23, 3
      %p200 = pnand %p198, %p199
      %p201 = pneg %p200
      // Predicated region
      $region9: #{tpu_custom_call.1} parent=5 // pred_check
        _
      $region10: #{tpu_custom_call.1} parent=5 // pred_check_branch
        %203 = sbr.rel (%p200) target = $region12
      $region11: #{tpu_custom_call.1} parent=5 // pred_region
        %s204 = ssub.s32 %s23, 1
        // Predicated region
        $region13: #{tpu_custom_call.1} parent=11 // pred_check
          %p205 = pneg %p96
        $region14: #{tpu_custom_call.1} parent=11 // pred_check_branch
          %207 = sbr.rel (%p205) target = $region16
        $region15: #{tpu_custom_call.1} parent=11 // pred_region
          %s209 = ssub.s32 2048, 2048
          %210 = vsyncadd [#allocation6], %s209
          %s211 = sshll.u32 [#allocation5], 4
          %s212 = int_to_ptr.vmem [resolvable:$true] %s211
          %217 = dma.hbm_to_vmem [thread:$0]  %s2, 2048, %s212, [#allocation6], 128, 128, 8
        $region16: #{tpu_custom_call.1} parent=11 // pred_fallthru
          _
        // Predicated region
        $region17: #{tpu_custom_call.1} parent=11 // pred_check
          %p218 = pneg %p117
        $region18: #{tpu_custom_call.1} parent=11 // pred_check_branch
          %220 = sbr.rel (%p218) target = $region20
        $region19: #{tpu_custom_call.1} parent=11 // pred_region
          _
        $region20: #{tpu_custom_call.1} parent=11 // pred_fallthru
          _
        // Predicated region
        $region21: #{tpu_custom_call.1} parent=11 // pred_check
          %p221 = pneg %p138
        $region22: #{tpu_custom_call.1} parent=11 // pred_check_branch
          %223 = sbr.rel (%p221) target = $region24
        $region23: #{tpu_custom_call.1} parent=11 // pred_region
          _
        $region24: #{tpu_custom_call.1} parent=11 // pred_fallthru
          _
      $region12: #{tpu_custom_call.1} parent=5 // pred_fallthru
        _
      %p224 = scmp.lt.s32.totalorder %s23, 2
      // Predicated region
      $region25: #{tpu_custom_call.1} parent=5 // pred_check
        %p225 = pneg %p224
      $region26: #{tpu_custom_call.1} parent=5 // pred_check_branch
        %227 = sbr.rel (%p225) target = $region28
      $region27: #{tpu_custom_call.1} parent=5 // pred_region
        // Predicated region
        $region29: #{tpu_custom_call.1} parent=27 // pred_check
          %p228 = pneg %p43
        $region30: #{tpu_custom_call.1} parent=27 // pred_check_branch
          %230 = sbr.rel (%p228) target = $region32
        $region31: #{tpu_custom_call.1} parent=27 // pred_region
          %s231 = sand.u32 %s33, 1
          %s232 = scalar_lea.sflag [#allocation3], %s231
          %s233 = sand.u32 %s33, 1
          %s234 = smul.addr %s233, 8
          %s235 = scalar_lea.vmem [#allocation2], %s234
          %s237 = ssub.s32 128, 128
          %238 = vsyncadd %s232, %s237
          %s239 = smul.addr %s23, 128
          %s240 = scalar_lea.hbm %s0, %s239
          %s242 = sshll.u32 %s235, 4
          %s243 = int_to_ptr.vmem [resolvable:$true] %s242
          %245 = dma.hbm_to_vmem [thread:$0]  %s240, 128, %s243, %s232
        $region32: #{tpu_custom_call.1} parent=27 // pred_fallthru
          _
        // Predicated region
        $region33: #{tpu_custom_call.1} parent=27 // pred_check
          %p246 = pneg %p69
        $region34: #{tpu_custom_call.1} parent=27 // pred_check_branch
          %248 = sbr.rel (%p246) target = $region36
        $region35: #{tpu_custom_call.1} parent=27 // pred_region
          %p249 = scmp.lt.s32.totalorder %s23, 1
          %s250 = scalar_select %p249, %s23, 1
          %s251 = smul.addr %s250, 8
          %s252 = scalar_lea.vmem %s1, %s251
        $region36: #{tpu_custom_call.1} parent=27 // pred_fallthru
          _
      $region28: #{tpu_custom_call.1} parent=5 // pred_fallthru
        _
      %p253 = scmp.le.s32.totalorder 1, %s23
      %p254 = scmp.lt.s32.totalorder %s23, 3
      %p255 = pnand %p253, %p254
      %p256 = pneg %p255
      // Predicated region
      $region37: #{tpu_custom_call.1} parent=5 // pred_check
        _
      $region38: #{tpu_custom_call.1} parent=5 // pred_check_branch
        %258 = sbr.rel (%p255) target = $region40
      $region39: #{tpu_custom_call.1} parent=5 // pred_region
        %s259 = ssub.s32 %s23, 1
        %s260 = sand.u32 %s36, 1
        %s261 = scalar_lea.sflag [#allocation3], %s260
        %s262 = sand.u32 %s36, 1
        %s263 = smul.addr %s262, 8
        %s264 = scalar_lea.vmem [#allocation2], %s263
        // Predicated region
        $region41: #{tpu_custom_call.1} parent=39 // pred_check
          %p265 = pneg %p49
        $region42: #{tpu_custom_call.1} parent=39 // pred_check_branch
          %267 = sbr.rel (%p265) target = $region44
        $region43: #{tpu_custom_call.1} parent=39 // pred_region
          %268 = dma.done %s261, 128
        $region44: #{tpu_custom_call.1} parent=39 // pred_fallthru
          _
        // Predicated region
        $region45: #{tpu_custom_call.1} parent=39 // pred_check
          %p269 = pneg %p96
        $region46: #{tpu_custom_call.1} parent=39 // pred_check_branch
          %271 = sbr.rel (%p269) target = $region48
        $region47: #{tpu_custom_call.1} parent=39 // pred_region
          %272 = dma.done [#allocation6], 2048
        $region48: #{tpu_custom_call.1} parent=39 // pred_fallthru
          _
        %s273 = sand.u32 %s36, 1
        %s274 = scalar_lea.sflag [#allocation3], %s273
        %s275 = sand.u32 %s36, 1
        %s276 = smul.addr %s275, 8
        %s277 = scalar_lea.vmem [#allocation2], %s276
        %p278 = pneg %p49
        %p279 = pneg %p46
        %p280 = scmp.lt.s32.totalorder %s28, 1
        %s281 = scalar_select %p280, %s28, 1
        %s282 = smul.addr %s281, 8
        %s283 = scalar_lea.vmem %s1, %s282
        %p284 = pneg %p75
        %p285 = pneg %p72
        %p286 = pneg %p96
        %p287 = pneg %p93
        %p288 = pneg %p117
        %p289 = pneg %p114
        %p290 = pneg %p138
        %p291 = pneg %p135
        %p292 = pneg %p164
        %p293 = pneg %p161
        %s294 = sand.u32 %s151, 1
        %s295 = scalar_lea.sflag [#allocation4], %s294
        %s296 = sand.u32 %s151, 1
        %s297 = smul.addr %s296, 8
        %s298 = scalar_lea.vmem [#allocation7], %s297
        %p299 = pneg %p190
        %p300 = pneg %p187
        %s301 = sand.u32 %s177, 1
        %s302 = scalar_lea.sflag [#allocation9], %s301
        %s303 = sand.u32 %s177, 1
        %s304 = smul.addr %s303, 8
        %s305 = scalar_lea.vmem [#allocation8], %s304
        %p306 = scmp.lt.s32.totalorder %s28, 1
        %s307 = scalar_select %p306, %s28, 1
        %s308 = smul.addr %s307, 8
        %s309 = scalar_lea.vmem %s1, %s308
        %v310 = vld [vmem:[%s264] sm:$0xff]
        %v311 = vld [vmem:[#allocation5] sm:$0xff]
        %v312 = vld [vmem:[#allocation5 + $0x8] sm:$0xff]
        %v313 = vld [vmem:[#allocation5 + $0x10] sm:$0xff]
        %v314 = vld [vmem:[#allocation5 + $0x18] sm:$0xff]
        %v315 = vld [vmem:[#allocation5 + $0x20] sm:$0xff]
        %v316 = vld [vmem:[#allocation5 + $0x28] sm:$0xff]
        %v317 = vld [vmem:[#allocation5 + $0x30] sm:$0xff]
        %v318 = vld [vmem:[#allocation5 + $0x38] sm:$0xff]
        %v319 = vld [vmem:[#allocation5 + $0x40] sm:$0xff]
        %v320 = vld [vmem:[#allocation5 + $0x48] sm:$0xff]
        %v321 = vld [vmem:[#allocation5 + $0x50] sm:$0xff]
        %v322 = vld [vmem:[#allocation5 + $0x58] sm:$0xff]
        %v323 = vld [vmem:[#allocation5 + $0x60] sm:$0xff]
        %v324 = vld [vmem:[#allocation5 + $0x68] sm:$0xff]
        %v325 = vld [vmem:[#allocation5 + $0x70] sm:$0xff]
        %v326 = vld [vmem:[#allocation5 + $0x78] sm:$0xff]
        %v327 = vld [vmem:[%s3] sm:$0x1]
        %v329 = vlaneseq
        %v330 = vshrl.u32 %v329, 7
        %v331 = vsub.s32 0, %v330
        %v332 = vrot.slane %v327, %v331
        %334 = vmatprep.subr.mxu0 0.0
        %335 = vmatpush1.msra.mxu0 %v311
        %336 = vmatprep.subr.mxu0 0.0
        %337 = vmatpush1.msra.mxu0 %v312
        %338 = vmatprep.subr.mxu0 0.0
        %339 = vmatpush1.msra.mxu0 %v313
        %340 = vmatprep.subr.mxu0 0.0
        %341 = vmatpush1.msra.mxu0 %v314
        %342 = vmatprep.subr.mxu0 0.0
        %343 = vmatpush1.msra.mxu0 %v315
        %344 = vmatprep.subr.mxu0 0.0
        %345 = vmatpush1.msra.mxu0 %v316
        %346 = vmatprep.subr.mxu0 0.0
        %347 = vmatpush1.msra.mxu0 %v317
        %348 = vmatprep.subr.mxu0 0.0
        %349 = vmatpush1.msra.mxu0 %v318
        %350 = vmatprep.subr.mxu0 0.0
        %351 = vmatpush1.msra.mxu0 %v319
        %352 = vmatprep.subr.mxu0 0.0
        %353 = vmatpush1.msra.mxu0 %v320
        %354 = vmatprep.subr.mxu0 0.0
        %355 = vmatpush1.msra.mxu0 %v321
        %356 = vmatprep.subr.mxu0 0.0
        %357 = vmatpush1.msra.mxu0 %v322
        %358 = vmatprep.subr.mxu0 0.0
        %359 = vmatpush1.msra.mxu0 %v323
        %360 = vmatprep.subr.mxu0 0.0
        %361 = vmatpush1.msra.mxu0 %v324
        %362 = vmatprep.subr.mxu0 0.0
        %363 = vmatpush1.msra.mxu0 %v325
        %364 = vmatprep.subr.mxu0 0.0
        %365 = vmatpush1.msra.mxu0 %v326
        %366 = vmatprep.subr.mxu0 0.0
        %367 = vmatpush1.msra.mxu0 0.0
        %368 = vmatprep.subr.mxu0 0.0
        %369 = vmatpush1.msra.mxu0 0.0
        %370 = vmatprep.subr.mxu0 0.0
        %371 = vmatpush1.msra.mxu0 0.0
        %372 = vmatprep.subr.mxu0 0.0
        %373 = vmatpush1.msra.mxu0 0.0
        %374 = vmatprep.subr.mxu0 0.0
        %375 = vmatpush1.msra.mxu0 0.0
        %376 = vmatprep.subr.mxu0 0.0
        %377 = vmatpush1.msra.mxu0 0.0
        %378 = vmatprep.subr.mxu0 0.0
        %379 = vmatpush1.msra.mxu0 0.0
        %380 = vmatprep.subr.mxu0 0.0
        %381 = vmatpush1.msra.mxu0 0.0
        %382 = vmatprep.subr.mxu0 0.0
        %383 = vmatpush1.msra.mxu0 0.0
        %384 = vmatprep.subr.mxu0 0.0
        %385 = vmatpush1.msra.mxu0 0.0
        %386 = vmatprep.subr.mxu0 0.0
        %387 = vmatpush1.msra.mxu0 0.0
        %388 = vmatprep.subr.mxu0 0.0
        %389 = vmatpush1.msra.mxu0 0.0
        %390 = vmatprep.subr.mxu0 0.0
        %391 = vmatpush1.msra.mxu0 0.0
        %392 = vmatprep.subr.mxu0 0.0
        %393 = vmatpush1.msra.mxu0 0.0
        %394 = vmatprep.subr.mxu0 0.0
        %395 = vmatpush1.msra.mxu0 0.0
        %396 = vmatprep.subr.mxu0 0.0
        %397 = vmatpush1.msra.mxu0 0.0
        %398 = vmatprep.mubr.f32.mxu0 0.0
        %399 = vmatmul.mubr.f32.gmra.mrb[0].mxu0 %v310
        %v400 = vpop.f32.mrb[0].mxu0
        %v401 = vadd.f32 %v332, %v400
        %v402 = vpop.f32.mrb[0].mxu0
        %403 = vdwg.mxu0
        %404 = vst [vmem:[%s305] sm:$0xff] %v401
        %v405 = vld [vmem:[%s309] sm:$0xff]
        %v406 = vlaneseq
        %v407 = vand.u32 %v406, 127
        %408 = vset.pattern.permute.xlu0 0
        %409 = vperm.xlu0 %408, %v405
        %v410 = vpop.permute.xlu0 %409
        %vm411 = vcmp.eq.s32.totalorder %v407, %v410
        %v412 = vsel %vm411, 1, 0
        %v413 = vcvt.s32.f32 %v412
        %v414 = vld [vmem:[%s4] sm:$0xff]
        %v415 = vld [vmem:[%s4 + $0x8] sm:$0xff]
        %v416 = vld [vmem:[%s4 + $0x10] sm:$0xff]
        %vm417 = vcmask 195584
        %v419 = vsel %vm417, %v413, 0
        %421 = vmatprep.subr.mxu0 0.0
        %422 = vmatpush1.msra.mxu0 %v414
        %423 = vmatprep.subr.mxu0 0.0
        %424 = vmatpush1.msra.mxu0 %v415
        %425 = vmatprep.subr.mxu0 0.0
        %426 = vmatpush1.msra.mxu0 %v416
        %427 = vmatprep.subr.mxu0 0.0
        %428 = vmatpush1.msra.mxu0 0.0
        %429 = vmatprep.subr.mxu0 0.0
        %430 = vmatpush1.msra.mxu0 0.0
        %431 = vmatprep.subr.mxu0 0.0
        %432 = vmatpush1.msra.mxu0 0.0
        %433 = vmatprep.subr.mxu0 0.0
        %434 = vmatpush1.msra.mxu0 0.0
        %435 = vmatprep.subr.mxu0 0.0
        %436 = vmatpush1.msra.mxu0 0.0
        %437 = vmatprep.subr.mxu0 0.0
        %438 = vmatpush1.msra.mxu0 0.0
        %439 = vmatprep.subr.mxu0 0.0
        %440 = vmatpush1.msra.mxu0 0.0
        %441 = vmatprep.subr.mxu0 0.0
        %442 = vmatpush1.msra.mxu0 0.0
        %443 = vmatprep.subr.mxu0 0.0
        %444 = vmatpush1.msra.mxu0 0.0
        %445 = vmatprep.subr.mxu0 0.0
        %446 = vmatpush1.msra.mxu0 0.0
        %447 = vmatprep.subr.mxu0 0.0
        %448 = vmatpush1.msra.mxu0 0.0
        %449 = vmatprep.subr.mxu0 0.0
        %450 = vmatpush1.msra.mxu0 0.0
        %451 = vmatprep.subr.mxu0 0.0
        %452 = vmatpush1.msra.mxu0 0.0
        %453 = vmatprep.subr.mxu0 0.0
        %454 = vmatpush1.msra.mxu0 0.0
        %455 = vmatprep.subr.mxu0 0.0
        %456 = vmatpush1.msra.mxu0 0.0
        %457 = vmatprep.subr.mxu0 0.0
        %458 = vmatpush1.msra.mxu0 0.0
        %459 = vmatprep.subr.mxu0 0.0
        %460 = vmatpush1.msra.mxu0 0.0
        %461 = vmatprep.subr.mxu0 0.0
        %462 = vmatpush1.msra.mxu0 0.0
        %463 = vmatprep.subr.mxu0 0.0
        %464 = vmatpush1.msra.mxu0 0.0
        %465 = vmatprep.subr.mxu0 0.0
        %466 = vmatpush1.msra.mxu0 0.0
        %467 = vmatprep.subr.mxu0 0.0
        %468 = vmatpush1.msra.mxu0 0.0
        %469 = vmatprep.subr.mxu0 0.0
        %470 = vmatpush1.msra.mxu0 0.0
        %471 = vmatprep.subr.mxu0 0.0
        %472 = vmatpush1.msra.mxu0 0.0
        %473 = vmatprep.subr.mxu0 0.0
        %474 = vmatpush1.msra.mxu0 0.0
        %475 = vmatprep.subr.mxu0 0.0
        %476 = vmatpush1.msra.mxu0 0.0
        %477 = vmatprep.subr.mxu0 0.0
        %478 = vmatpush1.msra.mxu0 0.0
        %479 = vmatprep.subr.mxu0 0.0
        %480 = vmatpush1.msra.mxu0 0.0
        %481 = vmatprep.subr.mxu0 0.0
        %482 = vmatpush1.msra.mxu0 0.0
        %483 = vmatprep.subr.mxu0 0.0
        %484 = vmatpush1.msra.mxu0 0.0
        %485 = vmatprep.mubr.f32.mxu0 0.0
        %486 = vmatmul.mubr.f32.gmra.mrb[0].mxu0 %v419
        %v487 = vpop.f32.mrb[0].mxu0
        %v488 = vadd.f32 0.0, %v487
        %v489 = vpop.f32.mrb[0].mxu0
        %490 = vdwg.mxu0
        %491 = vst [vmem:[%s298] sm:$0xff] %v488
        %s492 = sand.u32 %s151, 1
        %s493 = scalar_lea.sflag [#allocation4], %s492
        %s494 = sand.u32 %s151, 1
        %s495 = smul.addr %s494, 8
        %s496 = scalar_lea.vmem [#allocation7], %s495
        %s497 = sand.u32 %s177, 1
        %s498 = scalar_lea.sflag [#allocation9], %s497
        %s499 = sand.u32 %s177, 1
        %s500 = smul.addr %s499, 8
        %s501 = scalar_lea.vmem [#allocation8], %s500
        // Predicated region
        $region49: #{tpu_custom_call.1} parent=39 // pred_check
          %p502 = pneg %p161
        $region50: #{tpu_custom_call.1} parent=39 // pred_check_branch
          %504 = sbr.rel (%p502) target = $region52
        $region51: #{tpu_custom_call.1} parent=39 // pred_region
          %s506 = ssub.s32 128, 128
          %507 = vsyncadd %s493, %s506
          %s508 = smul.addr %s28, 128
          %s509 = scalar_lea.hbm %s5, %s508
          %s511 = sshll.u32 %s496, 4
          %s512 = int_to_ptr.vmem [resolvable:$true] %s511
          %514 = dma.vmem_to_hbm [thread:$0]  %s512, 128, %s509, %s493
        $region52: #{tpu_custom_call.1} parent=39 // pred_fallthru
          _
        // Predicated region
        $region53: #{tpu_custom_call.1} parent=39 // pred_check
          %p515 = pneg %p187
        $region54: #{tpu_custom_call.1} parent=39 // pred_check_branch
          %517 = sbr.rel (%p515) target = $region56
        $region55: #{tpu_custom_call.1} parent=39 // pred_region
          %s519 = ssub.s32 128, 128
          %520 = vsyncadd %s498, %s519
          %s521 = smul.addr %s28, 128
          %s522 = scalar_lea.hbm %s6, %s521
          %s524 = sshll.u32 %s501, 4
          %s525 = int_to_ptr.vmem [resolvable:$true] %s524
          %527 = dma.vmem_to_hbm [thread:$0]  %s525, 128, %s522, %s498
        $region56: #{tpu_custom_call.1} parent=39 // pred_fallthru
          _
      $region40: #{tpu_custom_call.1} parent=5 // pred_fallthru
        _
      %p528 = scmp.le.s32.totalorder 2, %s23
      // Predicated region
      $region57: #{tpu_custom_call.1} parent=5 // pred_check
        %p529 = pneg %p528
      $region58: #{tpu_custom_call.1} parent=5 // pred_check_branch
        %531 = sbr.rel (%p529) target = $region60
      $region59: #{tpu_custom_call.1} parent=5 // pred_region
        %s532 = ssub.s32 %s23, 2
        // Predicated region
        $region61: #{tpu_custom_call.1} parent=59 // pred_check
          %p533 = pneg %p167
        $region62: #{tpu_custom_call.1} parent=59 // pred_check_branch
          %535 = sbr.rel (%p533) target = $region64
        $region63: #{tpu_custom_call.1} parent=59 // pred_region
          %s536 = sand.u32 %s152, 1
          %s537 = scalar_lea.sflag [#allocation4], %s536
          %s538 = sand.u32 %s152, 1
          %s539 = smul.addr %s538, 8
          %s540 = scalar_lea.vmem [#allocation7], %s539
          %541 = dma.done %s537, 128
        $region64: #{tpu_custom_call.1} parent=59 // pred_fallthru
          _
        // Predicated region
        $region65: #{tpu_custom_call.1} parent=59 // pred_check
          %p542 = pneg %p193
        $region66: #{tpu_custom_call.1} parent=59 // pred_check_branch
          %544 = sbr.rel (%p542) target = $region68
        $region67: #{tpu_custom_call.1} parent=59 // pred_region
          %s545 = sand.u32 %s178, 1
          %s546 = scalar_lea.sflag [#allocation9], %s545
          %s547 = sand.u32 %s178, 1
          %s548 = smul.addr %s547, 8
          %s549 = scalar_lea.vmem [#allocation8], %s548
          %550 = dma.done %s546, 128
        $region68: #{tpu_custom_call.1} parent=59 // pred_fallthru
          _
      $region60: #{tpu_custom_call.1} parent=5 // pred_fallthru
        _
    $region6: #{tpu_custom_call.1} parent=1 // loop_footer
      %s27 = sadd.s32 1, %s23
    $region7: #{tpu_custom_call.1} parent=1 // loop_footer_branch
      %22 = sbr.rel target = $region3
    $region8: #{tpu_custom_call.1} parent=1 // loop_exit
      _
    %551 = vsyncpa [#allocation3], 1
    %s552 = scalar_lea.sflag [#allocation3], 1
    %553 = vsyncpa %s552, 1
    %554 = vsyncpa [#allocation6], 1
    %555 = vsyncpa [#allocation4], 1
    %s556 = scalar_lea.sflag [#allocation4], 1
    %557 = vsyncpa %s556, 1
    %558 = vsyncpa [#allocation9], 1
    %s559 = scalar_lea.sflag [#allocation9], 1
    %560 = vsyncpa %s559, 1

</llo_original>
